<compile_context>
chip_gen: v7x
topology: tpu7x:2x2x1
jax: 0.10.0
libtpu: 0.0.40
codegen_flags: <defaults>
</compile_context>

<pallas_src>
import functools

import jax
import jax.numpy as jnp
from jax import lax
from jax.experimental import pallas as pl
from jax.experimental.pallas import tpu as pltpu


# ----------------------------------------------------------------------------- kernel
def _vae_encoder_kernel(x_ref, *rest, n_hidden):
    """rest layout: [W_i, b_i, gamma_i, beta_i] * n_hidden, W_head, b_head, out_ref."""
    layer_refs = rest[: 4 * n_hidden]
    wml_ref, bml_ref = rest[4 * n_hidden], rest[4 * n_hidden + 1]
    out_ref = rest[-1]

    h = x_ref[...]                                           # [TB, D]

    # (Linear -> LayerNorm -> LeakyReLU -> Dropout) * n_hidden.
    # Layer 0's Linear already has the seq_len==1 attention value/output projections
    # folded in (host-side fusion: W0 = Wv @ Wo @ W1).
    for li in range(n_hidden):
        w_ref, b_ref, g_ref, be_ref = layer_refs[4 * li: 4 * li + 4]
        h = jnp.dot(h.astype(w_ref.dtype), w_ref[...],
                    preferred_element_type=jnp.float32) + b_ref[...]
        mean = jnp.mean(h, axis=-1, keepdims=True)
        c = h - mean
        var = jnp.mean(c * c, axis=-1, keepdims=True)        # two-pass variance
        h = c * lax.rsqrt(var + 1e-5) * g_ref[...] + be_ref[...]
        h = jnp.maximum(h, 0.01 * h)                         # LeakyReLU(0.01)
        # TODO(synk): Dropout(0.2) is identity in eval mode; training-mode RNG mask omitted.

    # Fused [mu | logvar] head: one matmul, one store.
    out_ref[...] = (jnp.dot(h.astype(wml_ref.dtype), wml_ref[...],
                            preferred_element_type=jnp.float32) + bml_ref[...])


# ----------------------------------------------------------------------------- params
def init_vae_encoder_params(key, input_dim, hidden_dims, latent_dim):
    def linear(k, din, dout):
        k1, k2 = jax.random.split(k)
        w = jax.random.normal(k1, (din, dout), jnp.float32) / jnp.sqrt(jnp.float32(din))
        b = 0.05 * jax.random.normal(k2, (1, dout), jnp.float32)
        return w, b

    keys = jax.random.split(key, 8 + len(hidden_dims))
    p = {}
    p["wq"], p["bq"] = linear(keys[0], input_dim, input_dim)   # dead math when seq==1,
    p["wk"], p["bk"] = linear(keys[1], input_dim, input_dim)   # kept for the reference path
    p["wv"], p["bv"] = linear(keys[2], input_dim, input_dim)
    p["wo"], p["bo"] = linear(keys[3], input_dim, input_dim)

    layers = []
    cur = input_dim
    for i, hdim in enumerate(hidden_dims):
        w, b = linear(keys[4 + i], cur, hdim)
        layers.append((w, b, jnp.ones((1, hdim), jnp.float32), jnp.zeros((1, hdim), jnp.float32)))
        cur = hdim
    p["layers"] = layers
    p["wmu"], p["bmu"] = linear(keys[-2], cur, latent_dim)
    p["wlv"], p["blv"] = linear(keys[-1], cur, latent_dim)
    return p


def prepare_encoder_params(params, compute_dtype=jnp.float32):
    """One-time host-side prep: attention->Linear fusion, mu/logvar head fusion, dtype cast."""
    layers = list(params["layers"])
    w1, b1, g1, be1 = layers[0]
    # seq_len == 1: attention chain is purely linear up to the first encoder Linear.
    w0 = params["wv"] @ params["wo"] @ w1
    b0 = (params["bv"] @ params["wo"] + params["bo"]) @ w1 + b1
    fused_layers = [(w0, b0, g1, be1)] + layers[1:]

    latent_dim = params["wmu"].shape[1]
    two_l = 2 * latent_dim
    # Lane-dense pad only when the head is already near/above a full 128-lane register.
    out_cols = two_l if two_l < 128 else ((two_l + 127) // 128) * 128
    wml = jnp.concatenate([params["wmu"], params["wlv"]], axis=1)
    bml = jnp.concatenate([params["bmu"], params["blv"]], axis=1)
    if out_cols != two_l:
        wml = jnp.pad(wml, ((0, 0), (0, out_cols - two_l)))
        bml = jnp.pad(bml, ((0, 0), (0, out_cols - two_l)))

    cd = jnp.dtype(compute_dtype)
    return {
        "layers": [(w.astype(cd), b.astype(jnp.float32),
                    g.astype(jnp.float32), be.astype(jnp.float32))
                   for (w, b, g, be) in fused_layers],
        "wml": wml.astype(cd),
        "bml": bml.astype(jnp.float32),
    }


# ----------------------------------------------------------------------------- forward
@functools.partial(jax.jit, static_argnames=("latent_dim", "n_heads", "batch_tile"))
def vae_encoder_forward(x, prepped, *, latent_dim, n_heads=4, batch_tile=512):
    """x: [batch, input_dim] float32. Returns (mu, logvar, attention_weights)."""
    B, D = x.shape
    n_hidden = len(prepped["layers"])
    out_cols = prepped["wml"].shape[1]
    compute_dtype = prepped["wml"].dtype

    # ---- batch tiling: TB multiple of 8; keep >= 2 grid steps when possible so the
    # "parallel" batch axis shards across both v7x TensorCores.
    B8 = ((B + 7) // 8) * 8
    TB = max(8, (min(batch_tile, B8) // 8) * 8)
    if B8 // TB < 2 and B8 >= 16:
        TB = max(8, ((B8 // 2) // 8) * 8)
    Bpad = ((B + TB - 1) // TB) * TB
    xp = x if Bpad == B else jnp.pad(x, ((0, Bpad - B), (0, 0)))
    xp = xp.astype(compute_dtype)

    inputs = [xp]
    for (w, b, g, be) in prepped["layers"]:
        inputs.extend([w, b, g, be])
    inputs.extend([prepped["wml"], prepped["bml"]])

    def full_spec(a):
        # Whole array resident in VMEM; constant index_map -> DMA'd once, never re-fetched.
        # (Tiny weights, so the pipeline's second buffer is negligible; for very wide
        #  hidden dims, add an output-feature grid axis instead of whole-array residency.)
        return pl.BlockSpec(a.shape, lambda i, nd=a.ndim: (0,) * nd)

    in_specs = [pl.BlockSpec((TB, D), lambda i: (i, 0))]
    in_specs += [full_spec(a) for a in inputs[1:]]

    # Explicit VMEM budget: 2x (double-buffer) tiles + weights + headroom,
    # clamped to [32 MiB, 48 MiB] (>= scoped defaults everywhere, < v7x 64 MiB physical).
    blk_bytes = TB * D * jnp.dtype(compute_dtype).itemsize + TB * out_cols * 4
    w_bytes = sum(int(a.size) * a.dtype.itemsize for a in inputs[1:])
    vmem_limit = int(min(max(2 * (blk_bytes + w_bytes) + (8 << 20), 32 << 20), 48 << 20))

    kern = functools.partial(_vae_encoder_kernel, n_hidden=n_hidden)

    out = pl.pallas_call(
        kern,
        grid=(Bpad // TB,),
        out_shape=jax.ShapeDtypeStruct((Bpad, out_cols), jnp.float32),
        in_specs=in_specs,
        out_specs=pl.BlockSpec((TB, out_cols), lambda i: (i, 0)),
        compiler_params=pltpu.CompilerParams(
            dimension_semantics=("parallel",),
            vmem_limit_bytes=vmem_limit),
    )(*inputs)

    mu = out[:B, :latent_dim]
    logvar = out[:B, latent_dim:2 * latent_dim]
    # softmax over a length-1 sequence axis is identically 1.0
    attention_weights = jnp.ones((B, n_heads, 1, 1), jnp.float32)
    return mu, logvar, attention_weights


# ----------------------------------------------------------------------------- reference
def _reference_forward(x, params, *, n_heads=4):
    B, D = x.shape
    hd = D // n_heads
    q = x @ params["wq"] + params["bq"]
    k = x @ params["wk"] + params["bk"]
    v = x @ params["wv"] + params["bv"]
    qh = q.reshape(B, 1, n_heads, hd).transpose(0, 2, 1, 3)
    kh = k.reshape(B, 1, n_heads, hd).transpose(0, 2, 1, 3)
    vh = v.reshape(B, 1, n_heads, hd).transpose(0, 2, 1, 3)
    scores = jnp.einsum("bhqd,bhkd->bhqk", qh, kh) / jnp.sqrt(jnp.float32(hd))
    attn_w = jax.nn.softmax(scores, axis=-1)
    attn_out = jnp.einsum("bhqk,bhkd->bhqd", attn_w, vh)
    attn_flat = attn_out.transpose(0, 2, 1, 3).reshape(B, D)
    h = attn_flat @ params["wo"] + params["bo"]
    for (w, b, g, be) in params["layers"]:
        h = h @ w + b
        mean = jnp.mean(h, axis=-1, keepdims=True)
        var = jnp.mean((h - mean) ** 2, axis=-1, keepdims=True)
        h = (h - mean) / jnp.sqrt(var + 1e-5) * g + be
        h = jnp.where(h >= 0, h, 0.01 * h)
    mu = h @ params["wmu"] + params["bmu"]
    logvar = h @ params["wlv"] + params["blv"]
    return mu, logvar, attn_w


# ----------------------------------------------------------------------------- main
if __name__ == "__main__":
    key = jax.random.PRNGKey(0)
    k_x, k_p = jax.random.split(key)

    batch, input_dim, latent_dim = 2, 32, 16
    hidden_dims = [64, 32]

    x = jax.random.normal(k_x, (batch, input_dim), jnp.float32)
    params = init_vae_encoder_params(k_p, input_dim, hidden_dims, latent_dim)

    mu_ref, logvar_ref, attn_ref = _reference_forward(x, params)

    # ---- f32 path (default): must match the reference tightly ----
    prepped = prepare_encoder_params(params)                       # one-time host prep
    mu, logvar, attn_w = vae_encoder_forward(x, prepped, latent_dim=latent_dim)
    jax.block_until_ready((mu, logvar, attn_w))

    assert mu.shape == (batch, latent_dim)
    assert logvar.shape == (batch, latent_dim)
    assert attn_w.shape == (batch, 4, 1, 1)
    assert jnp.allclose(mu, mu_ref, rtol=1e-3, atol=1e-3)
    assert jnp.allclose(logvar, logvar_ref, rtol=1e-3, atol=1e-3)
    assert jnp.allclose(attn_w, attn_ref, rtol=1e-3, atol=1e-3)

    # ---- bf16 matmul path (halved HBM traffic on v6e/v7x), loose tolerance smoke test ----
    prepped_bf16 = prepare_encoder_params(params, compute_dtype=jnp.bfloat16)
    mu16, logvar16, _ = vae_encoder_forward(x, prepped_bf16, latent_dim=latent_dim)
    jax.block_until_ready((mu16, logvar16))
    assert mu16.shape == (batch, latent_dim)
    assert jnp.allclose(mu16, mu_ref, rtol=1e-1, atol=1e-1)
    assert jnp.allclose(logvar16, logvar_ref, rtol=1e-1, atol=1e-1)

    print("KERNEL_OK")
</pallas_src>

<mosaic_0001>
module attributes {stable_mosaic.version = 11 : i64} {
  func.func @_vae_encoder_kernel(%arg0: i32, %arg1: memref<8x32xf32, #tpu.memory_space<vmem>>, %arg2: memref<32x64xf32, #tpu.memory_space<vmem>>, %arg3: memref<1x64xf32, #tpu.memory_space<vmem>>, %arg4: memref<1x64xf32, #tpu.memory_space<vmem>>, %arg5: memref<1x64xf32, #tpu.memory_space<vmem>>, %arg6: memref<64x32xf32, #tpu.memory_space<vmem>>, %arg7: memref<1x32xf32, #tpu.memory_space<vmem>>, %arg8: memref<1x32xf32, #tpu.memory_space<vmem>>, %arg9: memref<1x32xf32, #tpu.memory_space<vmem>>, %arg10: memref<32x32xf32, #tpu.memory_space<vmem>>, %arg11: memref<1x32xf32, #tpu.memory_space<vmem>>, %arg12: memref<8x32xf32, #tpu.memory_space<vmem>>) attributes {dimension_semantics = [#tpu.dimension_semantics<parallel>], iteration_bounds = array<i64: 1>, scalar_prefetch = 0 : i64, scratch_operands = 0 : i64, tpu.core_type = #tpu.core_type<tc>, window_params = [{transform_indices = @transform_0, window_bounds = array<i64: 8, 32>}, {pipeline_mode = #tpu.pipeline_mode<synchronous>, transform_indices = @transform_1, window_bounds = array<i64: 32, 64>}, {pipeline_mode = #tpu.pipeline_mode<synchronous>, transform_indices = @transform_2, window_bounds = array<i64: 1, 64>}, {pipeline_mode = #tpu.pipeline_mode<synchronous>, transform_indices = @transform_3, window_bounds = array<i64: 1, 64>}, {pipeline_mode = #tpu.pipeline_mode<synchronous>, transform_indices = @transform_4, window_bounds = array<i64: 1, 64>}, {pipeline_mode = #tpu.pipeline_mode<synchronous>, transform_indices = @transform_5, window_bounds = array<i64: 64, 32>}, {pipeline_mode = #tpu.pipeline_mode<synchronous>, transform_indices = @transform_6, window_bounds = array<i64: 1, 32>}, {pipeline_mode = #tpu.pipeline_mode<synchronous>, transform_indices = @transform_7, window_bounds = array<i64: 1, 32>}, {pipeline_mode = #tpu.pipeline_mode<synchronous>, transform_indices = @transform_8, window_bounds = array<i64: 1, 32>}, {pipeline_mode = #tpu.pipeline_mode<synchronous>, transform_indices = @transform_9, window_bounds = array<i64: 32, 32>}, {pipeline_mode = #tpu.pipeline_mode<synchronous>, transform_indices = @transform_10, window_bounds = array<i64: 1, 32>}, {transform_indices = @transform_11, window_bounds = array<i64: 8, 32>}]} {
    %c0 = arith.constant 0 : index
    %c0_0 = arith.constant 0 : index
    %0 = vector.load %arg1[%c0, %c0_0] : memref<8x32xf32, #tpu.memory_space<vmem>>, vector<8x32xf32>
    %c0_1 = arith.constant 0 : index
    %c0_2 = arith.constant 0 : index
    %1 = vector.load %arg2[%c0_1, %c0_2] : memref<32x64xf32, #tpu.memory_space<vmem>>, vector<32x64xf32>
    %cst = arith.constant dense<0.000000e+00> : vector<8x64xf32>
    %2 = tpu.matmul %0, %1, %cst {dimension_numbers = #tpu.dot_dimension_numbers<[1], [0], [0], [1], [0, 0, 1, 1], [], []>} : vector<8x32xf32>, vector<32x64xf32>, vector<8x64xf32> -> vector<8x64xf32>
    %c0_3 = arith.constant 0 : index
    %c0_4 = arith.constant 0 : index
    %3 = vector.load %arg3[%c0_3, %c0_4] : memref<1x64xf32, #tpu.memory_space<vmem>>, vector<1x64xf32>
    %4 = vector.broadcast %3 : vector<1x64xf32> to vector<8x64xf32>
    %5 = arith.addf %2, %4 : vector<8x64xf32>
    %cst_5 = arith.constant dense<0.000000e+00> : vector<8xf32>
    %6 = vector.multi_reduction <add>, %5, %cst_5 [1] : vector<8x64xf32> to vector<8xf32>
    %7 = vector.shape_cast %6 : vector<8xf32> to vector<8x1xf32>
    %cst_6 = arith.constant 6.400000e+01 : f32
    %8 = vector.broadcast %cst_6 : f32 to vector<8x1xf32>
    %9 = arith.divf %7, %8 : vector<8x1xf32>
    %10 = vector.broadcast %9 : vector<8x1xf32> to vector<8x64xf32>
    %11 = arith.subf %5, %10 : vector<8x64xf32>
    %12 = arith.mulf %11, %11 : vector<8x64xf32>
    %cst_7 = arith.constant dense<0.000000e+00> : vector<8xf32>
    %13 = vector.multi_reduction <add>, %12, %cst_7 [1] : vector<8x64xf32> to vector<8xf32>
    %14 = vector.shape_cast %13 : vector<8xf32> to vector<8x1xf32>
    %cst_8 = arith.constant 6.400000e+01 : f32
    %15 = vector.broadcast %cst_8 : f32 to vector<8x1xf32>
    %16 = arith.divf %14, %15 : vector<8x1xf32>
    %cst_9 = arith.constant 9.99999974E-6 : f32
    %17 = vector.broadcast %cst_9 : f32 to vector<8x1xf32>
    %18 = arith.addf %16, %17 : vector<8x1xf32>
    %19 = math.rsqrt %18 : vector<8x1xf32>
    %20 = vector.broadcast %19 : vector<8x1xf32> to vector<8x64xf32>
    %21 = arith.mulf %11, %20 : vector<8x64xf32>
    %c0_10 = arith.constant 0 : index
    %c0_11 = arith.constant 0 : index
    %22 = vector.load %arg4[%c0_10, %c0_11] : memref<1x64xf32, #tpu.memory_space<vmem>>, vector<1x64xf32>
    %23 = vector.broadcast %22 : vector<1x64xf32> to vector<8x64xf32>
    %24 = arith.mulf %21, %23 : vector<8x64xf32>
    %c0_12 = arith.constant 0 : index
    %c0_13 = arith.constant 0 : index
    %25 = vector.load %arg5[%c0_12, %c0_13] : memref<1x64xf32, #tpu.memory_space<vmem>>, vector<1x64xf32>
    %26 = vector.broadcast %25 : vector<1x64xf32> to vector<8x64xf32>
    %27 = arith.addf %24, %26 : vector<8x64xf32>
    %cst_14 = arith.constant 0.00999999977 : f32
    %28 = vector.broadcast %cst_14 : f32 to vector<8x64xf32>
    %29 = arith.mulf %28, %27 : vector<8x64xf32>
    %30 = arith.maximumf %27, %29 : vector<8x64xf32>
    %c0_15 = arith.constant 0 : index
    %c0_16 = arith.constant 0 : index
    %31 = vector.load %arg6[%c0_15, %c0_16] : memref<64x32xf32, #tpu.memory_space<vmem>>, vector<64x32xf32>
    %cst_17 = arith.constant dense<0.000000e+00> : vector<8x32xf32>
    %32 = tpu.matmul %30, %31, %cst_17 {dimension_numbers = #tpu.dot_dimension_numbers<[1], [0], [0], [1], [0, 0, 1, 1], [], []>} : vector<8x64xf32>, vector<64x32xf32>, vector<8x32xf32> -> vector<8x32xf32>
    %c0_18 = arith.constant 0 : index
    %c0_19 = arith.constant 0 : index
    %33 = vector.load %arg7[%c0_18, %c0_19] : memref<1x32xf32, #tpu.memory_space<vmem>>, vector<1x32xf32>
    %34 = vector.broadcast %33 : vector<1x32xf32> to vector<8x32xf32>
    %35 = arith.addf %32, %34 : vector<8x32xf32>
    %cst_20 = arith.constant dense<0.000000e+00> : vector<8xf32>
    %36 = vector.multi_reduction <add>, %35, %cst_20 [1] : vector<8x32xf32> to vector<8xf32>
    %37 = vector.shape_cast %36 : vector<8xf32> to vector<8x1xf32>
    %cst_21 = arith.constant 3.200000e+01 : f32
    %38 = vector.broadcast %cst_21 : f32 to vector<8x1xf32>
    %39 = arith.divf %37, %38 : vector<8x1xf32>
    %40 = vector.broadcast %39 : vector<8x1xf32> to vector<8x32xf32>
    %41 = arith.subf %35, %40 : vector<8x32xf32>
    %42 = arith.mulf %41, %41 : vector<8x32xf32>
    %cst_22 = arith.constant dense<0.000000e+00> : vector<8xf32>
    %43 = vector.multi_reduction <add>, %42, %cst_22 [1] : vector<8x32xf32> to vector<8xf32>
    %44 = vector.shape_cast %43 : vector<8xf32> to vector<8x1xf32>
    %cst_23 = arith.constant 3.200000e+01 : f32
    %45 = vector.broadcast %cst_23 : f32 to vector<8x1xf32>
    %46 = arith.divf %44, %45 : vector<8x1xf32>
    %cst_24 = arith.constant 9.99999974E-6 : f32
    %47 = vector.broadcast %cst_24 : f32 to vector<8x1xf32>
    %48 = arith.addf %46, %47 : vector<8x1xf32>
    %49 = math.rsqrt %48 : vector<8x1xf32>
    %50 = vector.broadcast %49 : vector<8x1xf32> to vector<8x32xf32>
    %51 = arith.mulf %41, %50 : vector<8x32xf32>
    %c0_25 = arith.constant 0 : index
    %c0_26 = arith.constant 0 : index
    %52 = vector.load %arg8[%c0_25, %c0_26] : memref<1x32xf32, #tpu.memory_space<vmem>>, vector<1x32xf32>
    %53 = vector.broadcast %52 : vector<1x32xf32> to vector<8x32xf32>
    %54 = arith.mulf %51, %53 : vector<8x32xf32>
    %c0_27 = arith.constant 0 : index
    %c0_28 = arith.constant 0 : index
    %55 = vector.load %arg9[%c0_27, %c0_28] : memref<1x32xf32, #tpu.memory_space<vmem>>, vector<1x32xf32>
    %56 = vector.broadcast %55 : vector<1x32xf32> to vector<8x32xf32>
    %57 = arith.addf %54, %56 : vector<8x32xf32>
    %cst_29 = arith.constant 0.00999999977 : f32
    %58 = vector.broadcast %cst_29 : f32 to vector<8x32xf32>
    %59 = arith.mulf %58, %57 : vector<8x32xf32>
    %60 = arith.maximumf %57, %59 : vector<8x32xf32>
    %c0_30 = arith.constant 0 : index
    %c0_31 = arith.constant 0 : index
    %61 = vector.load %arg10[%c0_30, %c0_31] : memref<32x32xf32, #tpu.memory_space<vmem>>, vector<32x32xf32>
    %cst_32 = arith.constant dense<0.000000e+00> : vector<8x32xf32>
    %62 = tpu.matmul %60, %61, %cst_32 {dimension_numbers = #tpu.dot_dimension_numbers<[1], [0], [0], [1], [0, 0, 1, 1], [], []>} : vector<8x32xf32>, vector<32x32xf32>, vector<8x32xf32> -> vector<8x32xf32>
    %c0_33 = arith.constant 0 : index
    %c0_34 = arith.constant 0 : index
    %63 = vector.load %arg11[%c0_33, %c0_34] : memref<1x32xf32, #tpu.memory_space<vmem>>, vector<1x32xf32>
    %64 = vector.broadcast %63 : vector<1x32xf32> to vector<8x32xf32>
    %65 = arith.addf %62, %64 : vector<8x32xf32>
    %c0_35 = arith.constant 0 : index
    %c0_36 = arith.constant 0 : index
    %66 = vector.load %arg12[%c0_35, %c0_36] : memref<8x32xf32, #tpu.memory_space<vmem>>, vector<8x32xf32>
    tpu.vector_store %arg12[%c0_35, %c0_36], %65 {strides = array<i32>} : memref<8x32xf32, #tpu.memory_space<vmem>>, vector<8x32xf32>,
    return
  }
  func.func @transform_0(%arg0: i32) -> (i32, i32) {
    %c0_i32 = arith.constant 0 : i32
    %c0_i32_0 = arith.constant 0 : i32
    return %arg0, %c0_i32 : i32, i32
  }
  func.func @transform_1(%arg0: i32) -> (i32, i32) {
    %c0_i32 = arith.constant 0 : i32
    %c0_i32_0 = arith.constant 0 : i32
    %c0_i32_1 = arith.constant 0 : i32
    return %c0_i32, %c0_i32_0 : i32, i32
  }
  func.func @transform_2(%arg0: i32) -> (i32, i32) {
    %c0_i32 = arith.constant 0 : i32
    %c0_i32_0 = arith.constant 0 : i32
    %c0_i32_1 = arith.constant 0 : i32
    return %c0_i32, %c0_i32_0 : i32, i32
  }
  func.func @transform_3(%arg0: i32) -> (i32, i32) {
    %c0_i32 = arith.constant 0 : i32
    %c0_i32_0 = arith.constant 0 : i32
    %c0_i32_1 = arith.constant 0 : i32
    return %c0_i32, %c0_i32_0 : i32, i32
  }
  func.func @transform_4(%arg0: i32) -> (i32, i32) {
    %c0_i32 = arith.constant 0 : i32
    %c0_i32_0 = arith.constant 0 : i32
    %c0_i32_1 = arith.constant 0 : i32
    return %c0_i32, %c0_i32_0 : i32, i32
  }
  func.func @transform_5(%arg0: i32) -> (i32, i32) {
    %c0_i32 = arith.constant 0 : i32
    %c0_i32_0 = arith.constant 0 : i32
    %c0_i32_1 = arith.constant 0 : i32
    return %c0_i32, %c0_i32_0 : i32, i32
  }
  func.func @transform_6(%arg0: i32) -> (i32, i32) {
    %c0_i32 = arith.constant 0 : i32
    %c0_i32_0 = arith.constant 0 : i32
    %c0_i32_1 = arith.constant 0 : i32
    return %c0_i32, %c0_i32_0 : i32, i32
  }
  func.func @transform_7(%arg0: i32) -> (i32, i32) {
    %c0_i32 = arith.constant 0 : i32
    %c0_i32_0 = arith.constant 0 : i32
    %c0_i32_1 = arith.constant 0 : i32
    return %c0_i32, %c0_i32_0 : i32, i32
  }
  func.func @transform_8(%arg0: i32) -> (i32, i32) {
    %c0_i32 = arith.constant 0 : i32
    %c0_i32_0 = arith.constant 0 : i32
    %c0_i32_1 = arith.constant 0 : i32
    return %c0_i32, %c0_i32_0 : i32, i32
  }
  func.func @transform_9(%arg0: i32) -> (i32, i32) {
    %c0_i32 = arith.constant 0 : i32
    %c0_i32_0 = arith.constant 0 : i32
    %c0_i32_1 = arith.constant 0 : i32
    return %c0_i32, %c0_i32_0 : i32, i32
  }
  func.func @transform_10(%arg0: i32) -> (i32, i32) {
    %c0_i32 = arith.constant 0 : i32
    %c0_i32_0 = arith.constant 0 : i32
    %c0_i32_1 = arith.constant 0 : i32
    return %c0_i32, %c0_i32_0 : i32, i32
  }
  func.func @transform_11(%arg0: i32) -> (i32, i32) {
    %c0_i32 = arith.constant 0 : i32
    %c0_i32_0 = arith.constant 0 : i32
    return %arg0, %c0_i32 : i32, i32
  }
}

</mosaic_0001>

<llo_original>
// kernel: vae_encoder_forward.1
$region0: #{vae_encoder_forward.1}
  #allocation0 [shape = 'u32[]', space=smem, size = 0x4, offset = 0x4, fixed_abs, tag = 'smem constant byte address 0x4 - core index']
  #allocation1 [shape = 'u32[144,128]{1,0:T(1,128)}', space=vmem, size = 0x12000, scoped, tag = 'internal scratch']
  %s0 = inlined_call_operand.vmem [shape: f32[8,32], index: 0, kind: input, shape index: {}]
  %s1 = inlined_call_operand.vmem [shape: f32[32,64], index: 1, kind: input, shape index: {}]
  %s2 = inlined_call_operand.vmem [shape: f32[1,64], index: 2, kind: input, shape index: {}]
  %s3 = inlined_call_operand.vmem [shape: f32[1,64], index: 3, kind: input, shape index: {}]
  %s4 = inlined_call_operand.vmem [shape: f32[1,64], index: 4, kind: input, shape index: {}]
  %s5 = inlined_call_operand.vmem [shape: f32[64,32], index: 5, kind: input, shape index: {}]
  %s6 = inlined_call_operand.vmem [shape: f32[1,32], index: 6, kind: input, shape index: {}]
  %s7 = inlined_call_operand.vmem [shape: f32[1,32], index: 7, kind: input, shape index: {}]
  %s8 = inlined_call_operand.vmem [shape: f32[1,32], index: 8, kind: input, shape index: {}]
  %s9 = inlined_call_operand.vmem [shape: f32[32,32], index: 9, kind: input, shape index: {}]
  %s10 = inlined_call_operand.vmem [shape: f32[1,32], index: 10, kind: input, shape index: {}]
  %s11 = inlined_call_operand.vmem [shape: f32[8,32], index: 11, kind: output, shape index: {}]
  %s12 = sld [smem:[#allocation0]]
  $region54: #{vae_encoder_forward.1} parent=0
    _
  %s14 = ssub.s32 1, %s12
  %s15 = scalar_select 0, %s14, %s12
  // Predicated region
  $region2: #{vae_encoder_forward.1} parent=0 // pred_check
    _
  $region3: #{vae_encoder_forward.1} parent=0 // pred_check_branch
    %17 = sbr.rel (0) target = $region5
  $region4: #{vae_encoder_forward.1} parent=0 // pred_region
    _
  $region5: #{vae_encoder_forward.1} parent=0 // pred_fallthru
    _
  // Predicated region
  $region6: #{vae_encoder_forward.1} parent=0 // pred_check
    _
  $region7: #{vae_encoder_forward.1} parent=0 // pred_check_branch
    %19 = sbr.rel (0) target = $region9
  $region8: #{vae_encoder_forward.1} parent=0 // pred_region
    _
  $region9: #{vae_encoder_forward.1} parent=0 // pred_fallthru
    _
  // Predicated region
  $region10: #{vae_encoder_forward.1} parent=0 // pred_check
    _
  $region11: #{vae_encoder_forward.1} parent=0 // pred_check_branch
    %21 = sbr.rel (0) target = $region13
  $region12: #{vae_encoder_forward.1} parent=0 // pred_region
    _
  $region13: #{vae_encoder_forward.1} parent=0 // pred_fallthru
    _
  // Predicated region
  $region14: #{vae_encoder_forward.1} parent=0 // pred_check
    _
  $region15: #{vae_encoder_forward.1} parent=0 // pred_check_branch
    %23 = sbr.rel (0) target = $region17
  $region16: #{vae_encoder_forward.1} parent=0 // pred_region
    _
  $region17: #{vae_encoder_forward.1} parent=0 // pred_fallthru
    _
  // Predicated region
  $region18: #{vae_encoder_forward.1} parent=0 // pred_check
    _
  $region19: #{vae_encoder_forward.1} parent=0 // pred_check_branch
    %25 = sbr.rel (0) target = $region21
  $region20: #{vae_encoder_forward.1} parent=0 // pred_region
    _
  $region21: #{vae_encoder_forward.1} parent=0 // pred_fallthru
    _
  // Predicated region
  $region22: #{vae_encoder_forward.1} parent=0 // pred_check
    _
  $region23: #{vae_encoder_forward.1} parent=0 // pred_check_branch
    %27 = sbr.rel (0) target = $region25
  $region24: #{vae_encoder_forward.1} parent=0 // pred_region
    _
  $region25: #{vae_encoder_forward.1} parent=0 // pred_fallthru
    _
  // Predicated region
  $region26: #{vae_encoder_forward.1} parent=0 // pred_check
    _
  $region27: #{vae_encoder_forward.1} parent=0 // pred_check_branch
    %29 = sbr.rel (0) target = $region29
  $region28: #{vae_encoder_forward.1} parent=0 // pred_region
    _
  $region29: #{vae_encoder_forward.1} parent=0 // pred_fallthru
    _
  // Predicated region
  $region30: #{vae_encoder_forward.1} parent=0 // pred_check
    _
  $region31: #{vae_encoder_forward.1} parent=0 // pred_check_branch
    %31 = sbr.rel (0) target = $region33
  $region32: #{vae_encoder_forward.1} parent=0 // pred_region
    _
  $region33: #{vae_encoder_forward.1} parent=0 // pred_fallthru
    _
  // Predicated region
  $region34: #{vae_encoder_forward.1} parent=0 // pred_check
    _
  $region35: #{vae_encoder_forward.1} parent=0 // pred_check_branch
    %33 = sbr.rel (0) target = $region37
  $region36: #{vae_encoder_forward.1} parent=0 // pred_region
    _
  $region37: #{vae_encoder_forward.1} parent=0 // pred_fallthru
    _
  // Predicated region
  $region38: #{vae_encoder_forward.1} parent=0 // pred_check
    _
  $region39: #{vae_encoder_forward.1} parent=0 // pred_check_branch
    %35 = sbr.rel (0) target = $region41
  $region40: #{vae_encoder_forward.1} parent=0 // pred_region
    _
  $region41: #{vae_encoder_forward.1} parent=0 // pred_fallthru
    _
  // Predicated region
  $region42: #{vae_encoder_forward.1} parent=0 // pred_check
    _
  $region43: #{vae_encoder_forward.1} parent=0 // pred_check_branch
    %37 = sbr.rel (0) target = $region45
  $region44: #{vae_encoder_forward.1} parent=0 // pred_region
    _
  $region45: #{vae_encoder_forward.1} parent=0 // pred_fallthru
    _
  %v38 = vld [vmem:[%s0] sm:$0xff]
  %v39 = vld [vmem:[%s1] sm:$0xff]
  %v40 = vld [vmem:[%s1 + $0x8] sm:$0xff]
  %v41 = vld [vmem:[%s1 + $0x10] sm:$0xff]
  %v42 = vld [vmem:[%s1 + $0x18] sm:$0xff]
  %v43 = vld [vmem:[%s2] sm:$0x1]
  %v45 = vlaneseq
  %v46 = vshrl.u32 %v45, 7
  %v47 = vsub.s32 0, %v46
  %v48 = vrot.slane %v43, %v47
  %vm50 = vcmask 261120
  %v52 = vsel %vm50, %v38, 0
  %54 = vmatprep.subr.mxu0 0.0
  %55 = vmatpush1.msra.mxu0 %v39
  %56 = vmatprep.subr.mxu0 0.0
  %57 = vmatpush1.msra.mxu0 %v40
  %58 = vmatprep.subr.mxu0 0.0
  %59 = vmatpush1.msra.mxu0 %v41
  %60 = vmatprep.subr.mxu0 0.0
  %61 = vmatpush1.msra.mxu0 %v42
  %62 = vmatprep.subr.mxu0 0.0
  %63 = vmatpush1.msra.mxu0 0.0
  %64 = vmatprep.subr.mxu0 0.0
  %65 = vmatpush1.msra.mxu0 0.0
  %66 = vmatprep.subr.mxu0 0.0
  %67 = vmatpush1.msra.mxu0 0.0
  %68 = vmatprep.subr.mxu0 0.0
  %69 = vmatpush1.msra.mxu0 0.0
  %70 = vmatprep.subr.mxu0 0.0
  %71 = vmatpush1.msra.mxu0 0.0
  %72 = vmatprep.subr.mxu0 0.0
  %73 = vmatpush1.msra.mxu0 0.0
  %74 = vmatprep.subr.mxu0 0.0
  %75 = vmatpush1.msra.mxu0 0.0
  %76 = vmatprep.subr.mxu0 0.0
  %77 = vmatpush1.msra.mxu0 0.0
  %78 = vmatprep.subr.mxu0 0.0
  %79 = vmatpush1.msra.mxu0 0.0
  %80 = vmatprep.subr.mxu0 0.0
  %81 = vmatpush1.msra.mxu0 0.0
  %82 = vmatprep.subr.mxu0 0.0
  %83 = vmatpush1.msra.mxu0 0.0
  %84 = vmatprep.subr.mxu0 0.0
  %85 = vmatpush1.msra.mxu0 0.0
  %86 = vmatprep.subr.mxu0 0.0
  %87 = vmatpush1.msra.mxu0 0.0
  %88 = vmatprep.subr.mxu0 0.0
  %89 = vmatpush1.msra.mxu0 0.0
  %90 = vmatprep.subr.mxu0 0.0
  %91 = vmatpush1.msra.mxu0 0.0
  %92 = vmatprep.subr.mxu0 0.0
  %93 = vmatpush1.msra.mxu0 0.0
  %94 = vmatprep.subr.mxu0 0.0
  %95 = vmatpush1.msra.mxu0 0.0
  %96 = vmatprep.subr.mxu0 0.0
  %97 = vmatpush1.msra.mxu0 0.0
  %98 = vmatprep.subr.mxu0 0.0
  %99 = vmatpush1.msra.mxu0 0.0
  %100 = vmatprep.subr.mxu0 0.0
  %101 = vmatpush1.msra.mxu0 0.0
  %102 = vmatprep.subr.mxu0 0.0
  %103 = vmatpush1.msra.mxu0 0.0
  %104 = vmatprep.subr.mxu0 0.0
  %105 = vmatpush1.msra.mxu0 0.0
  %106 = vmatprep.subr.mxu0 0.0
  %107 = vmatpush1.msra.mxu0 0.0
  %108 = vmatprep.subr.mxu0 0.0
  %109 = vmatpush1.msra.mxu0 0.0
  %110 = vmatprep.subr.mxu0 0.0
  %111 = vmatpush1.msra.mxu0 0.0
  %112 = vmatprep.subr.mxu0 0.0
  %113 = vmatpush1.msra.mxu0 0.0
  %114 = vmatprep.subr.mxu0 0.0
  %115 = vmatpush1.msra.mxu0 0.0
  %116 = vmatprep.subr.mxu0 0.0
  %117 = vmatpush1.msra.mxu0 0.0
  %118 = vmatprep.mubr.f32.mxu0 0.0
  %119 = vmatmul.mubr.f32.gmra.mrb[0].mxu0 %v52
  %v120 = vpop.f32.mrb[0].mxu0
  %v121 = vadd.f32 %v48, %v120
  %v122 = vpop.f32.mrb[0].mxu0
  %123 = vdwg.mxu0
  %vm124 = vcmask 523264
  %v125 = vsel %vm124, %v121, 0.0
  %126 = vadd.xlane.f32.xlu0 %v125
  %v127 = vpop.xlane.xlu0 %126
  %v128 = vrcp.pop 64.0
  %v129 = vmul.f32 %v127, %v128
  %v130 = vsub.f32 %v121, %v129
  %v131 = vmul.f32 %v130, %v130
  %v132 = vsel %vm124, %v131, 0.0
  %133 = vadd.xlane.f32.xlu0 %v132
  %v134 = vpop.xlane.xlu0 %133
  %v135 = vmul.f32 %v134, %v128
  %v136 = vadd.f32 %v135, 1e-05
  %v137 = vrsqrt.pop %v136
  %v138 = vmul.f32 %v130, %v137
  %v139 = vld [vmem:[%s3] sm:$0x1]
  %v141 = vlaneseq
  %v142 = vshrl.u32 %v141, 7
  %v143 = vsub.s32 0, %v142
  %v144 = vrot.slane %v139, %v143
  %v146 = vmul.f32 %v138, %v144
  %v147 = vld [vmem:[%s4] sm:$0x1]
  %v149 = vlaneseq
  %v150 = vshrl.u32 %v149, 7
  %v151 = vsub.s32 0, %v150
  %v152 = vrot.slane %v147, %v151
  %v154 = vadd.f32 %v146, %v152
  %v155 = vmul.f32 %v154, 0.01
  %v156 = vmax.f32 %v154, %v155
  %v157 = vld [vmem:[%s5] sm:$0xff]
  %v158 = vld [vmem:[%s5 + $0x8] sm:$0xff]
  %v159 = vld [vmem:[%s5 + $0x10] sm:$0xff]
  %v160 = vld [vmem:[%s5 + $0x18] sm:$0xff]
  %v161 = vld [vmem:[%s5 + $0x20] sm:$0xff]
  %v162 = vld [vmem:[%s5 + $0x28] sm:$0xff]
  %v163 = vld [vmem:[%s5 + $0x30] sm:$0xff]
  %v164 = vld [vmem:[%s5 + $0x38] sm:$0xff]
  %v165 = vld [vmem:[%s6] sm:$0x1]
  %v167 = vlaneseq
  %v168 = vshrl.u32 %v167, 7
  %v169 = vsub.s32 0, %v168
  %v170 = vrot.slane %v165, %v169
  %v173 = vsel %vm124, %v156, 0
  %175 = vmatprep.subr.mxu0 0.0
  %176 = vmatpush1.msra.mxu0 %v157
  %177 = vmatprep.subr.mxu0 0.0
  %178 = vmatpush1.msra.mxu0 %v158
  %179 = vmatprep.subr.mxu0 0.0
  %180 = vmatpush1.msra.mxu0 %v159
  %181 = vmatprep.subr.mxu0 0.0
  %182 = vmatpush1.msra.mxu0 %v160
  %183 = vmatprep.subr.mxu0 0.0
  %184 = vmatpush1.msra.mxu0 %v161
  %185 = vmatprep.subr.mxu0 0.0
  %186 = vmatpush1.msra.mxu0 %v162
  %187 = vmatprep.subr.mxu0 0.0
  %188 = vmatpush1.msra.mxu0 %v163
  %189 = vmatprep.subr.mxu0 0.0
  %190 = vmatpush1.msra.mxu0 %v164
  %191 = vmatprep.subr.mxu0 0.0
  %192 = vmatpush1.msra.mxu0 0.0
  %193 = vmatprep.subr.mxu0 0.0
  %194 = vmatpush1.msra.mxu0 0.0
  %195 = vmatprep.subr.mxu0 0.0
  %196 = vmatpush1.msra.mxu0 0.0
  %197 = vmatprep.subr.mxu0 0.0
  %198 = vmatpush1.msra.mxu0 0.0
  %199 = vmatprep.subr.mxu0 0.0
  %200 = vmatpush1.msra.mxu0 0.0
  %201 = vmatprep.subr.mxu0 0.0
  %202 = vmatpush1.msra.mxu0 0.0
  %203 = vmatprep.subr.mxu0 0.0
  %204 = vmatpush1.msra.mxu0 0.0
  %205 = vmatprep.subr.mxu0 0.0
  %206 = vmatpush1.msra.mxu0 0.0
  %207 = vmatprep.subr.mxu0 0.0
  %208 = vmatpush1.msra.mxu0 0.0
  %209 = vmatprep.subr.mxu0 0.0
  %210 = vmatpush1.msra.mxu0 0.0
  %211 = vmatprep.subr.mxu0 0.0
  %212 = vmatpush1.msra.mxu0 0.0
  %213 = vmatprep.subr.mxu0 0.0
  %214 = vmatpush1.msra.mxu0 0.0
  %215 = vmatprep.subr.mxu0 0.0
  %216 = vmatpush1.msra.mxu0 0.0
  %217 = vmatprep.subr.mxu0 0.0
  %218 = vmatpush1.msra.mxu0 0.0
  %219 = vmatprep.subr.mxu0 0.0
  %220 = vmatpush1.msra.mxu0 0.0
  %221 = vmatprep.subr.mxu0 0.0
  %222 = vmatpush1.msra.mxu0 0.0
  %223 = vmatprep.subr.mxu0 0.0
  %224 = vmatpush1.msra.mxu0 0.0
  %225 = vmatprep.subr.mxu0 0.0
  %226 = vmatpush1.msra.mxu0 0.0
  %227 = vmatprep.subr.mxu0 0.0
  %228 = vmatpush1.msra.mxu0 0.0
  %229 = vmatprep.subr.mxu0 0.0
  %230 = vmatpush1.msra.mxu0 0.0
  %231 = vmatprep.subr.mxu0 0.0
  %232 = vmatpush1.msra.mxu0 0.0
  %233 = vmatprep.subr.mxu0 0.0
  %234 = vmatpush1.msra.mxu0 0.0
  %235 = vmatprep.subr.mxu0 0.0
  %236 = vmatpush1.msra.mxu0 0.0
  %237 = vmatprep.subr.mxu0 0.0
  %238 = vmatpush1.msra.mxu0 0.0
  %239 = vmatprep.mubr.f32.mxu0 0.0
  %240 = vmatmul.mubr.f32.gmra.mrb[0].mxu0 %v173
  %v241 = vpop.f32.mrb[0].mxu0
  %v242 = vadd.f32 %v170, %v241
  %v243 = vpop.f32.mrb[0].mxu0
  %244 = vdwg.mxu0
  %v245 = vsel %vm50, %v242, 0.0
  %246 = vadd.xlane.f32.xlu0 %v245
  %v247 = vpop.xlane.xlu0 %246
  %v248 = vrcp.pop 32.0
  %v249 = vmul.f32 %v247, %v248
  %v250 = vsub.f32 %v242, %v249
  %v251 = vmul.f32 %v250, %v250
  %v252 = vsel %vm50, %v251, 0.0
  %253 = vadd.xlane.f32.xlu0 %v252
  %v254 = vpop.xlane.xlu0 %253
  %v255 = vmul.f32 %v254, %v248
  %v256 = vadd.f32 %v255, 1e-05
  %v257 = vrsqrt.pop %v256
  %v258 = vmul.f32 %v250, %v257
  %v259 = vld [vmem:[%s7] sm:$0x1]
  %v261 = vlaneseq
  %v262 = vshrl.u32 %v261, 7
  %v263 = vsub.s32 0, %v262
  %v264 = vrot.slane %v259, %v263
  %v266 = vmul.f32 %v258, %v264
  %v267 = vld [vmem:[%s8] sm:$0x1]
  %v269 = vlaneseq
  %v270 = vshrl.u32 %v269, 7
  %v271 = vsub.s32 0, %v270
  %v272 = vrot.slane %v267, %v271
  %v274 = vadd.f32 %v266, %v272
  %v275 = vmul.f32 %v274, 0.01
  %v276 = vmax.f32 %v274, %v275
  %v277 = vld [vmem:[%s9] sm:$0xff]
  %v278 = vld [vmem:[%s9 + $0x8] sm:$0xff]
  %v279 = vld [vmem:[%s9 + $0x10] sm:$0xff]
  %v280 = vld [vmem:[%s9 + $0x18] sm:$0xff]
  %v281 = vld [vmem:[%s10] sm:$0x1]
  %v283 = vlaneseq
  %v284 = vshrl.u32 %v283, 7
  %v285 = vsub.s32 0, %v284
  %v286 = vrot.slane %v281, %v285
  %v289 = vsel %vm50, %v276, 0
  %291 = vmatprep.subr.mxu0 0.0
  %292 = vmatpush1.msra.mxu0 %v277
  %293 = vmatprep.subr.mxu0 0.0
  %294 = vmatpush1.msra.mxu0 %v278
  %295 = vmatprep.subr.mxu0 0.0
  %296 = vmatpush1.msra.mxu0 %v279
  %297 = vmatprep.subr.mxu0 0.0
  %298 = vmatpush1.msra.mxu0 %v280
  %299 = vmatprep.subr.mxu0 0.0
  %300 = vmatpush1.msra.mxu0 0.0
  %301 = vmatprep.subr.mxu0 0.0
  %302 = vmatpush1.msra.mxu0 0.0
  %303 = vmatprep.subr.mxu0 0.0
  %304 = vmatpush1.msra.mxu0 0.0
  %305 = vmatprep.subr.mxu0 0.0
  %306 = vmatpush1.msra.mxu0 0.0
  %307 = vmatprep.subr.mxu0 0.0
  %308 = vmatpush1.msra.mxu0 0.0
  %309 = vmatprep.subr.mxu0 0.0
  %310 = vmatpush1.msra.mxu0 0.0
  %311 = vmatprep.subr.mxu0 0.0
  %312 = vmatpush1.msra.mxu0 0.0
  %313 = vmatprep.subr.mxu0 0.0
  %314 = vmatpush1.msra.mxu0 0.0
  %315 = vmatprep.subr.mxu0 0.0
  %316 = vmatpush1.msra.mxu0 0.0
  %317 = vmatprep.subr.mxu0 0.0
  %318 = vmatpush1.msra.mxu0 0.0
  %319 = vmatprep.subr.mxu0 0.0
  %320 = vmatpush1.msra.mxu0 0.0
  %321 = vmatprep.subr.mxu0 0.0
  %322 = vmatpush1.msra.mxu0 0.0
  %323 = vmatprep.subr.mxu0 0.0
  %324 = vmatpush1.msra.mxu0 0.0
  %325 = vmatprep.subr.mxu0 0.0
  %326 = vmatpush1.msra.mxu0 0.0
  %327 = vmatprep.subr.mxu0 0.0
  %328 = vmatpush1.msra.mxu0 0.0
  %329 = vmatprep.subr.mxu0 0.0
  %330 = vmatpush1.msra.mxu0 0.0
  %331 = vmatprep.subr.mxu0 0.0
  %332 = vmatpush1.msra.mxu0 0.0
  %333 = vmatprep.subr.mxu0 0.0
  %334 = vmatpush1.msra.mxu0 0.0
  %335 = vmatprep.subr.mxu0 0.0
  %336 = vmatpush1.msra.mxu0 0.0
  %337 = vmatprep.subr.mxu0 0.0
  %338 = vmatpush1.msra.mxu0 0.0
  %339 = vmatprep.subr.mxu0 0.0
  %340 = vmatpush1.msra.mxu0 0.0
  %341 = vmatprep.subr.mxu0 0.0
  %342 = vmatpush1.msra.mxu0 0.0
  %343 = vmatprep.subr.mxu0 0.0
  %344 = vmatpush1.msra.mxu0 0.0
  %345 = vmatprep.subr.mxu0 0.0
  %346 = vmatpush1.msra.mxu0 0.0
  %347 = vmatprep.subr.mxu0 0.0
  %348 = vmatpush1.msra.mxu0 0.0
  %349 = vmatprep.subr.mxu0 0.0
  %350 = vmatpush1.msra.mxu0 0.0
  %351 = vmatprep.subr.mxu0 0.0
  %352 = vmatpush1.msra.mxu0 0.0
  %353 = vmatprep.subr.mxu0 0.0
  %354 = vmatpush1.msra.mxu0 0.0
  %355 = vmatprep.mubr.f32.mxu0 0.0
  %356 = vmatmul.mubr.f32.gmra.mrb[0].mxu0 %v289
  %v357 = vpop.f32.mrb[0].mxu0
  %v358 = vadd.f32 %v286, %v357
  %v359 = vpop.f32.mrb[0].mxu0
  %360 = vdwg.mxu0
  %361 = vst.msk [vmem:[%s11] sm:$0xff] %vm50, %v358
  // Predicated region
  $region46: #{vae_encoder_forward.1} parent=0 // pred_check
    _
  $region47: #{vae_encoder_forward.1} parent=0 // pred_check_branch
    %363 = sbr.rel (0) target = $region49
  $region48: #{vae_encoder_forward.1} parent=0 // pred_region
    _
  $region49: #{vae_encoder_forward.1} parent=0 // pred_fallthru
    _
  // Predicated region
  $region50: #{vae_encoder_forward.1} parent=0 // pred_check
    _
  $region51: #{vae_encoder_forward.1} parent=0 // pred_check_branch
    %365 = sbr.rel (0) target = $region53
  $region52: #{vae_encoder_forward.1} parent=0 // pred_region
    _
  $region53: #{vae_encoder_forward.1} parent=0 // pred_fallthru
    _

</llo_original>
